<compile_context>
chip_gen: v6e
topology: v6e:2x2x1
jax: 0.10.0
libtpu: 0.0.40
codegen_flags: <defaults>
</compile_context>

<pallas_src>
import functools

import jax
import jax.numpy as jnp
from jax.experimental import pallas as pl
from jax.experimental.pallas import tpu as pltpu

LANE = 128   # lane width: channel dims padded to this
TM = 128     # row tile


# ----------------------------- Pallas kernel --------------------------------

def _mlp_kernel(*refs, num_layers):
    # refs = (x_ref, w_0, aff_0, w_1, aff_1, ..., w_{L-1}, aff_{L-1}, o_ref)
    # aff_l rows: [0]=bias, [1]=bn_scale, [2]=bn_shift (f32).
    x_ref = refs[0]
    o_ref = refs[-1]

    h = x_ref[...]                      # (TM, C0) bf16
    for li in range(num_layers):
        w_ref = refs[1 + 2 * li]        # (Cin, Cout) bf16
        aff_ref = refs[2 + 2 * li]      # (3, Cout)  f32
        # MXU matmul in bf16 with f32 accumulation.
        y = jnp.dot(h, w_ref[...], preferred_element_type=jnp.float32)
        y = y + aff_ref[0:1, :]         # bias (f32, VPU)
        if li < num_layers - 1:
            # Linear -> ReLU -> BatchNorm(folded affine) -> Dropout(eval = id)
            y = jnp.maximum(y, 0.0)
            y = y * aff_ref[1:2, :] + aff_ref[2:3, :]
            h = y.astype(jnp.bfloat16)  # back to bf16 for the next MXU matmul
        else:
            h = y                       # final layer: no activation / BN
    o_ref[...] = h.astype(o_ref.dtype)


# ------------------------------- JAX glue ------------------------------------

def _round_up(v, m):
    return (v + m - 1) // m * m


def mlp_forward_pallas(x, weights, biases, bn_scale, bn_shift):
    """Fused MLP forward via a single pl.pallas_call (eval-mode semantics)."""
    num_layers = len(weights)
    n, c0 = x.shape
    n_pad = _round_up(max(n, TM), TM)

    dims = [c0] + [w.shape[1] for w in weights]
    dims_pad = [_round_up(d, LANE) for d in dims]

    # Pad rows + channels; cast activations/weights to bf16 for the MXU.
    x_p = jnp.zeros((n_pad, dims_pad[0]), jnp.bfloat16)
    x_p = x_p.at[:n, :c0].set(x.astype(jnp.bfloat16))

    operands = [x_p]
    in_specs = [pl.BlockSpec((TM, dims_pad[0]), lambda i: (i, 0))]

    for li in range(num_layers):
        cin, cout = dims[li], dims[li + 1]
        cin_p, cout_p = dims_pad[li], dims_pad[li + 1]

        w_p = jnp.zeros((cin_p, cout_p), jnp.bfloat16)
        w_p = w_p.at[:cin, :cout].set(weights[li].astype(jnp.bfloat16))

        # Packed per-layer constants: row 0 bias, row 1 bn scale, row 2 bn shift.
        aff = jnp.zeros((3, cout_p), jnp.float32)
        aff = aff.at[0, :cout].set(biases[li])
        if li < num_layers - 1:
            aff = aff.at[1, :cout].set(bn_scale[li])
            aff = aff.at[2, :cout].set(bn_shift[li])
        # (padded lanes keep scale/shift = 0 so padding stays exactly 0)

        operands += [w_p, aff]
        in_specs += [
            pl.BlockSpec((cin_p, cout_p), lambda i: (0, 0)),  # W resident across tiles
            pl.BlockSpec((3, cout_p), lambda i: (0, 0)),      # affine constants
        ]

    kernel = functools.partial(_mlp_kernel, num_layers=num_layers)
    out = pl.pallas_call(
        kernel,
        grid=(n_pad // TM,),
        in_specs=in_specs,
        out_specs=pl.BlockSpec((TM, dims_pad[-1]), lambda i: (i, 0)),
        out_shape=jax.ShapeDtypeStruct((n_pad, dims_pad[-1]), jnp.float32),
        compiler_params=pltpu.CompilerParams(
            dimension_semantics=("parallel",)),
    )(*operands)

    return out[:n, :dims[-1]]


def mlp_forward_ref(x, weights, biases, bn_scale, bn_shift):
    """Pure-JAX reference mirroring the kernel's bf16 matmul / f32 epilogue path."""
    num_layers = len(weights)
    h = x.astype(jnp.bfloat16)
    for li in range(num_layers):
        y = jnp.dot(h, weights[li].astype(jnp.bfloat16),
                    preferred_element_type=jnp.float32)
        y = y + biases[li][None, :]
        if li < num_layers - 1:
            y = jnp.maximum(y, 0.0)
            y = y * bn_scale[li][None, :] + bn_shift[li][None, :]
            h = y.astype(jnp.bfloat16)
        else:
            h = y
    return h


def init_mlp_params(key, in_channels, hidden_channels, out_channels,
                    num_layers, eps=1e-5):
    """nn.Linear-style uniform init; BatchNorm1d defaults folded to scale/shift."""
    dims = [in_channels] + [hidden_channels] * (num_layers - 1) + [out_channels]
    weights, biases, bn_scale, bn_shift = [], [], [], []
    for li in range(num_layers):
        fan_in, fan_out = dims[li], dims[li + 1]
        key, kw, kb = jax.random.split(key, 3)
        limit = 1.0 / jnp.sqrt(jnp.float32(fan_in))
        weights.append(jax.random.uniform(kw, (fan_in, fan_out), jnp.float32,
                                          -limit, limit))
        biases.append(jax.random.uniform(kb, (fan_out,), jnp.float32,
                                         -limit, limit))
        if li < num_layers - 1:
            gamma = jnp.ones((fan_out,), jnp.float32)
            beta = jnp.zeros((fan_out,), jnp.float32)
            running_mean = jnp.zeros((fan_out,), jnp.float32)
            running_var = jnp.ones((fan_out,), jnp.float32)
            scale = gamma * jax.lax.rsqrt(running_var + eps)
            shift = beta - running_mean * scale
            bn_scale.append(scale)
            bn_shift.append(shift)
    return weights, biases, bn_scale, bn_shift


# --------------------------------- main ---------------------------------------

if __name__ == "__main__":
    N, IN_C, HID_C, OUT_C, NUM_LAYERS = 64, 16, 32, 8, 3

    key = jax.random.PRNGKey(0)
    kx, kp = jax.random.split(key)

    x = jax.random.normal(kx, (N, IN_C), jnp.float32)
    weights, biases, bn_scale, bn_shift = init_mlp_params(
        kp, IN_C, HID_C, OUT_C, NUM_LAYERS)

    out = mlp_forward_pallas(x, weights, biases, bn_scale, bn_shift)
    jax.block_until_ready(out)
    assert out.shape == (N, OUT_C)

    ref = mlp_forward_ref(x, weights, biases, bn_scale, bn_shift)
    assert jnp.allclose(out, ref, atol=1e-1, rtol=1e-1)

    print("KERNEL_OK")
</pallas_src>

<mosaic_0001>
module attributes {stable_mosaic.version = 11 : i64} {
  func.func @_mlp_kernel(%arg0: i32, %arg1: memref<128x128xbf16, #tpu.memory_space<vmem>>, %arg2: memref<128x128xbf16, #tpu.memory_space<vmem>>, %arg3: memref<3x128xf32, #tpu.memory_space<vmem>>, %arg4: memref<128x128xbf16, #tpu.memory_space<vmem>>, %arg5: memref<3x128xf32, #tpu.memory_space<vmem>>, %arg6: memref<128x128xbf16, #tpu.memory_space<vmem>>, %arg7: memref<3x128xf32, #tpu.memory_space<vmem>>, %arg8: memref<128x128xf32, #tpu.memory_space<vmem>>) attributes {dimension_semantics = [#tpu.dimension_semantics<parallel>], iteration_bounds = array<i64: 1>, scalar_prefetch = 0 : i64, scratch_operands = 0 : i64, tpu.core_type = #tpu.core_type<tc>, window_params = [{transform_indices = @transform_0, window_bounds = array<i64: 128, 128>}, {pipeline_mode = #tpu.pipeline_mode<synchronous>, transform_indices = @transform_1, window_bounds = array<i64: 128, 128>}, {pipeline_mode = #tpu.pipeline_mode<synchronous>, transform_indices = @transform_2, window_bounds = array<i64: 3, 128>}, {pipeline_mode = #tpu.pipeline_mode<synchronous>, transform_indices = @transform_3, window_bounds = array<i64: 128, 128>}, {pipeline_mode = #tpu.pipeline_mode<synchronous>, transform_indices = @transform_4, window_bounds = array<i64: 3, 128>}, {pipeline_mode = #tpu.pipeline_mode<synchronous>, transform_indices = @transform_5, window_bounds = array<i64: 128, 128>}, {pipeline_mode = #tpu.pipeline_mode<synchronous>, transform_indices = @transform_6, window_bounds = array<i64: 3, 128>}, {transform_indices = @transform_7, window_bounds = array<i64: 128, 128>}]} {
    %c0 = arith.constant 0 : index
    %c0_0 = arith.constant 0 : index
    %0 = vector.load %arg1[%c0, %c0_0] : memref<128x128xbf16, #tpu.memory_space<vmem>>, vector<128x128xbf16>
    %c0_1 = arith.constant 0 : index
    %c0_2 = arith.constant 0 : index
    %1 = vector.load %arg2[%c0_1, %c0_2] : memref<128x128xbf16, #tpu.memory_space<vmem>>, vector<128x128xbf16>
    %cst = arith.constant dense<0.000000e+00> : vector<128x128xf32>
    %2 = tpu.matmul %0, %1, %cst {dimension_numbers = #tpu.dot_dimension_numbers<[1], [0], [0], [1], [0, 0, 1, 1], [], []>} : vector<128x128xbf16>, vector<128x128xbf16>, vector<128x128xf32> -> vector<128x128xf32>
    %c0_3 = arith.constant 0 : index
    %c0_4 = arith.constant 0 : index
    %3 = vector.load %arg3[%c0_3, %c0_4] : memref<3x128xf32, #tpu.memory_space<vmem>>, vector<1x128xf32>
    %4 = vector.broadcast %3 : vector<1x128xf32> to vector<128x128xf32>
    %5 = arith.addf %2, %4 : vector<128x128xf32>
    %cst_5 = arith.constant 0.000000e+00 : f32
    %6 = vector.broadcast %cst_5 : f32 to vector<128x128xf32>
    %7 = arith.maximumf %5, %6 : vector<128x128xf32>
    %c1 = arith.constant 1 : index
    %c0_6 = arith.constant 0 : index
    %8 = vector.load %arg3[%c1, %c0_6] : memref<3x128xf32, #tpu.memory_space<vmem>>, vector<1x128xf32>
    %9 = vector.broadcast %8 : vector<1x128xf32> to vector<128x128xf32>
    %10 = arith.mulf %7, %9 : vector<128x128xf32>
    %c2 = arith.constant 2 : index
    %c0_7 = arith.constant 0 : index
    %11 = vector.load %arg3[%c2, %c0_7] : memref<3x128xf32, #tpu.memory_space<vmem>>, vector<1x128xf32>
    %12 = vector.broadcast %11 : vector<1x128xf32> to vector<128x128xf32>
    %13 = arith.addf %10, %12 : vector<128x128xf32>
    %14 = arith.truncf %13 : vector<128x128xf32> to vector<128x128xbf16>
    %c0_8 = arith.constant 0 : index
    %c0_9 = arith.constant 0 : index
    %15 = vector.load %arg4[%c0_8, %c0_9] : memref<128x128xbf16, #tpu.memory_space<vmem>>, vector<128x128xbf16>
    %cst_10 = arith.constant dense<0.000000e+00> : vector<128x128xf32>
    %16 = tpu.matmul %14, %15, %cst_10 {dimension_numbers = #tpu.dot_dimension_numbers<[1], [0], [0], [1], [0, 0, 1, 1], [], []>} : vector<128x128xbf16>, vector<128x128xbf16>, vector<128x128xf32> -> vector<128x128xf32>
    %c0_11 = arith.constant 0 : index
    %c0_12 = arith.constant 0 : index
    %17 = vector.load %arg5[%c0_11, %c0_12] : memref<3x128xf32, #tpu.memory_space<vmem>>, vector<1x128xf32>
    %18 = vector.broadcast %17 : vector<1x128xf32> to vector<128x128xf32>
    %19 = arith.addf %16, %18 : vector<128x128xf32>
    %cst_13 = arith.constant 0.000000e+00 : f32
    %20 = vector.broadcast %cst_13 : f32 to vector<128x128xf32>
    %21 = arith.maximumf %19, %20 : vector<128x128xf32>
    %c1_14 = arith.constant 1 : index
    %c0_15 = arith.constant 0 : index
    %22 = vector.load %arg5[%c1_14, %c0_15] : memref<3x128xf32, #tpu.memory_space<vmem>>, vector<1x128xf32>
    %23 = vector.broadcast %22 : vector<1x128xf32> to vector<128x128xf32>
    %24 = arith.mulf %21, %23 : vector<128x128xf32>
    %c2_16 = arith.constant 2 : index
    %c0_17 = arith.constant 0 : index
    %25 = vector.load %arg5[%c2_16, %c0_17] : memref<3x128xf32, #tpu.memory_space<vmem>>, vector<1x128xf32>
    %26 = vector.broadcast %25 : vector<1x128xf32> to vector<128x128xf32>
    %27 = arith.addf %24, %26 : vector<128x128xf32>
    %28 = arith.truncf %27 : vector<128x128xf32> to vector<128x128xbf16>
    %c0_18 = arith.constant 0 : index
    %c0_19 = arith.constant 0 : index
    %29 = vector.load %arg6[%c0_18, %c0_19] : memref<128x128xbf16, #tpu.memory_space<vmem>>, vector<128x128xbf16>
    %cst_20 = arith.constant dense<0.000000e+00> : vector<128x128xf32>
    %30 = tpu.matmul %28, %29, %cst_20 {dimension_numbers = #tpu.dot_dimension_numbers<[1], [0], [0], [1], [0, 0, 1, 1], [], []>} : vector<128x128xbf16>, vector<128x128xbf16>, vector<128x128xf32> -> vector<128x128xf32>
    %c0_21 = arith.constant 0 : index
    %c0_22 = arith.constant 0 : index
    %31 = vector.load %arg7[%c0_21, %c0_22] : memref<3x128xf32, #tpu.memory_space<vmem>>, vector<1x128xf32>
    %32 = vector.broadcast %31 : vector<1x128xf32> to vector<128x128xf32>
    %33 = arith.addf %30, %32 : vector<128x128xf32>
    %c0_23 = arith.constant 0 : index
    %c0_24 = arith.constant 0 : index
    %34 = vector.load %arg8[%c0_23, %c0_24] : memref<128x128xf32, #tpu.memory_space<vmem>>, vector<128x128xf32>
    tpu.vector_store %arg8[%c0_23, %c0_24], %33 {strides = array<i32>} : memref<128x128xf32, #tpu.memory_space<vmem>>, vector<128x128xf32>,
    return
  }
  func.func @transform_0(%arg0: i32) -> (i32, i32) {
    %c0_i32 = arith.constant 0 : i32
    %c0_i32_0 = arith.constant 0 : i32
    return %arg0, %c0_i32 : i32, i32
  }
  func.func @transform_1(%arg0: i32) -> (i32, i32) {
    %c0_i32 = arith.constant 0 : i32
    %c0_i32_0 = arith.constant 0 : i32
    %c0_i32_1 = arith.constant 0 : i32
    return %c0_i32, %c0_i32_0 : i32, i32
  }
  func.func @transform_2(%arg0: i32) -> (i32, i32) {
    %c0_i32 = arith.constant 0 : i32
    %c0_i32_0 = arith.constant 0 : i32
    %c0_i32_1 = arith.constant 0 : i32
    return %c0_i32, %c0_i32_0 : i32, i32
  }
  func.func @transform_3(%arg0: i32) -> (i32, i32) {
    %c0_i32 = arith.constant 0 : i32
    %c0_i32_0 = arith.constant 0 : i32
    %c0_i32_1 = arith.constant 0 : i32
    return %c0_i32, %c0_i32_0 : i32, i32
  }
  func.func @transform_4(%arg0: i32) -> (i32, i32) {
    %c0_i32 = arith.constant 0 : i32
    %c0_i32_0 = arith.constant 0 : i32
    %c0_i32_1 = arith.constant 0 : i32
    return %c0_i32, %c0_i32_0 : i32, i32
  }
  func.func @transform_5(%arg0: i32) -> (i32, i32) {
    %c0_i32 = arith.constant 0 : i32
    %c0_i32_0 = arith.constant 0 : i32
    %c0_i32_1 = arith.constant 0 : i32
    return %c0_i32, %c0_i32_0 : i32, i32
  }
  func.func @transform_6(%arg0: i32) -> (i32, i32) {
    %c0_i32 = arith.constant 0 : i32
    %c0_i32_0 = arith.constant 0 : i32
    %c0_i32_1 = arith.constant 0 : i32
    return %c0_i32, %c0_i32_0 : i32, i32
  }
  func.func @transform_7(%arg0: i32) -> (i32, i32) {
    %c0_i32 = arith.constant 0 : i32
    %c0_i32_0 = arith.constant 0 : i32
    return %arg0, %c0_i32 : i32, i32
  }
}

</mosaic_0001>

<llo_original>
// kernel: tpu_custom_call.1
$region0: #{tpu_custom_call.1}
  #allocation0 [shape = 'u32[]', space=smem, size = 0x4, offset = 0x4, fixed_abs, tag = 'smem constant byte address 0x4 - core index']
  #allocation1 [shape = 'u32[144,128]{1,0:T(1,128)}', space=vmem, size = 0x12000, scoped, tag = 'internal scratch']
  %s0 = inlined_call_operand.hbm [shape: bf16[128,128], index: 0, kind: input, shape index: {}]
  %s1 = inlined_call_operand.hbm [shape: bf16[128,128], index: 1, kind: input, shape index: {}]
  %s2 = inlined_call_operand.hbm [shape: f32[3,128], index: 2, kind: input, shape index: {}]
  %s3 = inlined_call_operand.hbm [shape: bf16[128,128], index: 3, kind: input, shape index: {}]
  %s4 = inlined_call_operand.vmem [shape: f32[3,128], index: 4, kind: input, shape index: {}]
  %s5 = inlined_call_operand.hbm [shape: bf16[128,128], index: 5, kind: input, shape index: {}]
  %s6 = inlined_call_operand.vmem [shape: f32[3,128], index: 6, kind: input, shape index: {}]
  %s7 = inlined_call_operand.hbm [shape: f32[128,128], index: 7, kind: output, shape index: {}]
  %s8 = sld [smem:[#allocation0]]
  $region58: #{tpu_custom_call.1} parent=0
    _
  %s10 = ssub.s32 1, %s8
  %s11 = scalar_select 0, %s10, %s8
  $region1: #{tpu_custom_call.1} parent=0
    #allocation2 [shape = 'u8[32768]{0}', space=vmem, size = 0x8000, scoped, tag = 'input window, operand 0, single buffered']
    #allocation3 [shape = 's32[1]{0}', space=sflag, size = 0x4, scoped, tag = 'scoped memory for tpu_custom_call.1']
    #allocation4 [shape = 's32[1]{0}', space=sflag, size = 0x4, scoped, tag = 'scoped memory for tpu_custom_call.1']
    #allocation5 [shape = 'u8[32768]{0}', space=vmem, size = 0x8000, scoped, tag = 'input window, operand 1, single buffered']
    #allocation6 [shape = 's32[1]{0}', space=sflag, size = 0x4, scoped, tag = 'scoped memory for tpu_custom_call.1']
    #allocation7 [shape = 'u8[2048]{0}', space=vmem, size = 0x800, scoped, tag = 'input window, operand 2, single buffered']
    #allocation8 [shape = 'u8[32768]{0}', space=vmem, size = 0x8000, scoped, tag = 'input window, operand 3, single buffered']
    #allocation9 [shape = 's32[1]{0}', space=sflag, size = 0x4, scoped, tag = 'scoped memory for tpu_custom_call.1']
    #allocation10 [shape = 'u8[32768]{0}', space=vmem, size = 0x8000, scoped, tag = 'input window, operand 5, single buffered']
    #allocation11 [shape = 'u8[65536]{0}', space=vmem, size = 0x10000, scoped, tag = 'output window, operand 0, single buffered']
    %12 = vsyncpa [#allocation3], 0
    %13 = vsyncpa [#allocation6], 0
    %14 = vsyncpa [#allocation9], 0
    %15 = vsyncpa [#allocation4], 0
    // Predicated region
    $region2: #{tpu_custom_call.1} parent=1 // pred_check
      _
    $region3: #{tpu_custom_call.1} parent=1 // pred_check_branch
      %17 = sbr.rel (0) target = $region5
    $region4: #{tpu_custom_call.1} parent=1 // pred_region
      %s19 = ssub.s32 1024, 1024
      %20 = vsyncadd [#allocation3], %s19
      %s21 = sshll.u32 [#allocation2], 4
      %s22 = int_to_ptr.vmem [resolvable:$true] %s21
      %27 = dma.hbm_to_vmem [thread:$0]  %s0, 1024, %s22, [#allocation3], 64, 64, 4
    $region5: #{tpu_custom_call.1} parent=1 // pred_fallthru
      _
    // Predicated region
    $region6: #{tpu_custom_call.1} parent=1 // pred_check
      _
    $region7: #{tpu_custom_call.1} parent=1 // pred_check_branch
      %29 = sbr.rel (0) target = $region9
    $region8: #{tpu_custom_call.1} parent=1 // pred_region
      %s31 = ssub.s32 1024, 1024
      %32 = vsyncadd [#allocation6], %s31
      %s33 = sshll.u32 [#allocation5], 4
      %s34 = int_to_ptr.vmem [resolvable:$true] %s33
      %39 = dma.hbm_to_vmem [thread:$0]  %s1, 1024, %s34, [#allocation6], 64, 64, 4
    $region9: #{tpu_custom_call.1} parent=1 // pred_fallthru
      _
    // Predicated region
    $region10: #{tpu_custom_call.1} parent=1 // pred_check
      _
    $region11: #{tpu_custom_call.1} parent=1 // pred_check_branch
      %41 = sbr.rel (0) target = $region13
    $region12: #{tpu_custom_call.1} parent=1 // pred_region
      %s43 = ssub.s32 64, 64
      %44 = vsyncadd [#allocation6], %s43
      %s46 = sshll.u32 [#allocation7], 4
      %s47 = int_to_ptr.vmem [resolvable:$true] %s46
      %49 = dma.hbm_to_vmem [thread:$0]  %s2, 64, %s47, [#allocation6]
    $region13: #{tpu_custom_call.1} parent=1 // pred_fallthru
      _
    // Predicated region
    $region14: #{tpu_custom_call.1} parent=1 // pred_check
      _
    $region15: #{tpu_custom_call.1} parent=1 // pred_check_branch
      %51 = sbr.rel (0) target = $region17
    $region16: #{tpu_custom_call.1} parent=1 // pred_region
      %s53 = ssub.s32 1024, 1024
      %54 = vsyncadd [#allocation9], %s53
      %s55 = sshll.u32 [#allocation8], 4
      %s56 = int_to_ptr.vmem [resolvable:$true] %s55
      %61 = dma.hbm_to_vmem [thread:$0]  %s3, 1024, %s56, [#allocation9], 64, 64, 4
    $region17: #{tpu_custom_call.1} parent=1 // pred_fallthru
      _
    // Predicated region
    $region18: #{tpu_custom_call.1} parent=1 // pred_check
      _
    $region19: #{tpu_custom_call.1} parent=1 // pred_check_branch
      %63 = sbr.rel (0) target = $region21
    $region20: #{tpu_custom_call.1} parent=1 // pred_region
      _
    $region21: #{tpu_custom_call.1} parent=1 // pred_fallthru
      _
    // Predicated region
    $region22: #{tpu_custom_call.1} parent=1 // pred_check
      _
    $region23: #{tpu_custom_call.1} parent=1 // pred_check_branch
      %65 = sbr.rel (0) target = $region25
    $region24: #{tpu_custom_call.1} parent=1 // pred_region
      %s67 = ssub.s32 1024, 1024
      %68 = vsyncadd [#allocation9], %s67
      %s69 = sshll.u32 [#allocation10], 4
      %s70 = int_to_ptr.vmem [resolvable:$true] %s69
      %75 = dma.hbm_to_vmem [thread:$0]  %s5, 1024, %s70, [#allocation9], 64, 64, 4
    $region25: #{tpu_custom_call.1} parent=1 // pred_fallthru
      _
    // Predicated region
    $region26: #{tpu_custom_call.1} parent=1 // pred_check
      _
    $region27: #{tpu_custom_call.1} parent=1 // pred_check_branch
      %77 = sbr.rel (0) target = $region29
    $region28: #{tpu_custom_call.1} parent=1 // pred_region
      _
    $region29: #{tpu_custom_call.1} parent=1 // pred_fallthru
      _
    // Predicated region
    $region30: #{tpu_custom_call.1} parent=1 // pred_check
      _
    $region31: #{tpu_custom_call.1} parent=1 // pred_check_branch
      %79 = sbr.rel (0) target = $region33
    $region32: #{tpu_custom_call.1} parent=1 // pred_region
      %80 = dma.done [#allocation3], 1024
    $region33: #{tpu_custom_call.1} parent=1 // pred_fallthru
      _
    // Predicated region
    $region34: #{tpu_custom_call.1} parent=1 // pred_check
      _
    $region35: #{tpu_custom_call.1} parent=1 // pred_check_branch
      %82 = sbr.rel (0) target = $region37
    $region36: #{tpu_custom_call.1} parent=1 // pred_region
      %83 = dma.done [#allocation6], 1024
    $region37: #{tpu_custom_call.1} parent=1 // pred_fallthru
      _
    // Predicated region
    $region38: #{tpu_custom_call.1} parent=1 // pred_check
      _
    $region39: #{tpu_custom_call.1} parent=1 // pred_check_branch
      %85 = sbr.rel (0) target = $region41
    $region40: #{tpu_custom_call.1} parent=1 // pred_region
      %86 = dma.done [#allocation6], 64
    $region41: #{tpu_custom_call.1} parent=1 // pred_fallthru
      _
    // Predicated region
    $region42: #{tpu_custom_call.1} parent=1 // pred_check
      _
    $region43: #{tpu_custom_call.1} parent=1 // pred_check_branch
      %88 = sbr.rel (0) target = $region45
    $region44: #{tpu_custom_call.1} parent=1 // pred_region
      %89 = dma.done [#allocation9], 1024
    $region45: #{tpu_custom_call.1} parent=1 // pred_fallthru
      _
    // Predicated region
    $region46: #{tpu_custom_call.1} parent=1 // pred_check
      _
    $region47: #{tpu_custom_call.1} parent=1 // pred_check_branch
      %91 = sbr.rel (0) target = $region49
    $region48: #{tpu_custom_call.1} parent=1 // pred_region
      %92 = dma.done [#allocation9], 1024
    $region49: #{tpu_custom_call.1} parent=1 // pred_fallthru
      _
    %v94 = vld [vmem:[#allocation2] sm:$0xf]
    %v95 = vld [vmem:[#allocation2 + $0x4] sm:$0xf]
    %v96 = vld [vmem:[#allocation2 + $0x8] sm:$0xf]
    %v97 = vld [vmem:[#allocation2 + $0xc] sm:$0xf]
    %v98 = vld [vmem:[#allocation2 + $0x10] sm:$0xf]
    %v99 = vld [vmem:[#allocation2 + $0x14] sm:$0xf]
    %v100 = vld [vmem:[#allocation2 + $0x18] sm:$0xf]
    %v101 = vld [vmem:[#allocation2 + $0x1c] sm:$0xf]
    %v102 = vld [vmem:[#allocation2 + $0x20] sm:$0xf]
    %v103 = vld [vmem:[#allocation2 + $0x24] sm:$0xf]
    %v104 = vld [vmem:[#allocation2 + $0x28] sm:$0xf]
    %v105 = vld [vmem:[#allocation2 + $0x2c] sm:$0xf]
    %v106 = vld [vmem:[#allocation2 + $0x30] sm:$0xf]
    %v107 = vld [vmem:[#allocation2 + $0x34] sm:$0xf]
    %v108 = vld [vmem:[#allocation2 + $0x38] sm:$0xf]
    %v109 = vld [vmem:[#allocation2 + $0x3c] sm:$0xf]
    %v110 = vld [vmem:[#allocation5] sm:$0xf]
    %v111 = vld [vmem:[#allocation5 + $0x4] sm:$0xf]
    %v112 = vld [vmem:[#allocation5 + $0x8] sm:$0xf]
    %v113 = vld [vmem:[#allocation5 + $0xc] sm:$0xf]
    %v114 = vld [vmem:[#allocation5 + $0x10] sm:$0xf]
    %v115 = vld [vmem:[#allocation5 + $0x14] sm:$0xf]
    %v116 = vld [vmem:[#allocation5 + $0x18] sm:$0xf]
    %v117 = vld [vmem:[#allocation5 + $0x1c] sm:$0xf]
    %v118 = vld [vmem:[#allocation5 + $0x20] sm:$0xf]
    %v119 = vld [vmem:[#allocation5 + $0x24] sm:$0xf]
    %v120 = vld [vmem:[#allocation5 + $0x28] sm:$0xf]
    %v121 = vld [vmem:[#allocation5 + $0x2c] sm:$0xf]
    %v122 = vld [vmem:[#allocation5 + $0x30] sm:$0xf]
    %v123 = vld [vmem:[#allocation5 + $0x34] sm:$0xf]
    %v124 = vld [vmem:[#allocation5 + $0x38] sm:$0xf]
    %v125 = vld [vmem:[#allocation5 + $0x3c] sm:$0xf]
    %v126 = vld [vmem:[#allocation7] sm:$0x1]
    %v127 = vlaneseq
    %v128 = vshrl.u32 %v127, 7
    %v129 = vsub.s32 0, %v128
    %v130 = vrot.slane %v126, %v129
    %v147 = vunpack.c.l.b16 %v94
    %v148 = vunpack.c.l.b16 %v95
    %v149 = vunpack.c.l.b16 %v96
    %v150 = vunpack.c.l.b16 %v97
    %v151 = vunpack.c.l.b16 %v98
    %v152 = vunpack.c.l.b16 %v99
    %v153 = vunpack.c.l.b16 %v100
    %v154 = vunpack.c.l.b16 %v101
    %v155 = vunpack.c.l.b16 %v102
    %v156 = vunpack.c.l.b16 %v103
    %v157 = vunpack.c.l.b16 %v104
    %v158 = vunpack.c.l.b16 %v105
    %v159 = vunpack.c.l.b16 %v106
    %v160 = vunpack.c.l.b16 %v107
    %v161 = vunpack.c.l.b16 %v108
    %v162 = vunpack.c.l.b16 %v109
    %v163 = vpack.c.b16 %v148, %v147
    %v164 = vpack.c.b16 %v150, %v149
    %v165 = vpack.c.b16 %v152, %v151
    %v166 = vpack.c.b16 %v154, %v153
    %v167 = vpack.c.b16 %v156, %v155
    %v168 = vpack.c.b16 %v158, %v157
    %v169 = vpack.c.b16 %v160, %v159
    %v170 = vpack.c.b16 %v162, %v161
    %v195 = vunpack.c.l.b16 %v110
    %v196 = vunpack.c.l.b16 %v111
    %v197 = vunpack.c.l.b16 %v112
    %v198 = vunpack.c.l.b16 %v113
    %v199 = vunpack.c.l.b16 %v114
    %v200 = vunpack.c.l.b16 %v115
    %v201 = vunpack.c.l.b16 %v116
    %v202 = vunpack.c.l.b16 %v117
    %v203 = vunpack.c.l.b16 %v118
    %v204 = vunpack.c.l.b16 %v119
    %v205 = vunpack.c.l.b16 %v120
    %v206 = vunpack.c.l.b16 %v121
    %v207 = vunpack.c.l.b16 %v122
    %v208 = vunpack.c.l.b16 %v123
    %v209 = vunpack.c.l.b16 %v124
    %v210 = vunpack.c.l.b16 %v125
    %v211 = vpack.c.b16 %v196, %v195
    %v212 = vpack.c.b16 %v198, %v197
    %v213 = vpack.c.b16 %v200, %v199
    %v214 = vpack.c.b16 %v202, %v201
    %v215 = vpack.c.b16 %v204, %v203
    %v216 = vpack.c.b16 %v206, %v205
    %v217 = vpack.c.b16 %v208, %v207
    %v218 = vpack.c.b16 %v210, %v209
    %227 = vmatprep.subr.bf16.mxu0 0
    %228 = vmatpush1.bf16.msra.mxu0 %v218
    %229 = vmatprep.subr.bf16.mxu0 0
    %230 = vmatpush1.bf16.msra.mxu0 %v217
    %231 = vmatprep.subr.bf16.mxu0 0
    %232 = vmatpush1.bf16.msra.mxu0 %v216
    %233 = vmatprep.subr.bf16.mxu0 0
    %234 = vmatpush1.bf16.msra.mxu0 %v215
    %235 = vmatprep.subr.bf16.mxu0 0
    %236 = vmatpush1.bf16.msra.mxu0 %v214
    %237 = vmatprep.subr.bf16.mxu0 0
    %238 = vmatpush1.bf16.msra.mxu0 %v213
    %239 = vmatprep.subr.bf16.mxu0 0
    %240 = vmatpush1.bf16.msra.mxu0 %v212
    %241 = vmatprep.subr.bf16.mxu0 0
    %242 = vmatpush1.bf16.msra.mxu0 %v211
    %243 = vmatprep.subr.bf16.mxu0 0
    %244 = vmatpush2.bf16.msra.mxu0 0
    %245 = vmatprep.subr.bf16.mxu0 0
    %246 = vmatpush2.bf16.msra.mxu0 0
    %247 = vmatprep.subr.bf16.mxu0 0
    %248 = vmatpush2.bf16.msra.mxu0 0
    %249 = vmatprep.subr.bf16.mxu0 0
    %250 = vmatpush2.bf16.msra.mxu0 0
    %251 = vmatprep.subr.bf16.mxu0 0
    %252 = vmatpush2.bf16.msra.mxu0 0
    %253 = vmatprep.subr.bf16.mxu0 0
    %254 = vmatpush2.bf16.msra.mxu0 0
    %255 = vmatprep.subr.bf16.mxu0 0
    %256 = vmatpush2.bf16.msra.mxu0 0
    %257 = vmatprep.subr.bf16.mxu0 0
    %258 = vmatpush2.bf16.msra.mxu0 0
    %259 = vmatprep.mubr.bf16.mxu0 0
    %260 = vmatmul.mubr.bf16.gmra.mxu0 %v163
    %v261 = vpop.f32.mrf.mxu0
    %v262 = vadd.f32 %v130, %v261
    %v263 = vpop.f32.mrf.mxu0
    %v264 = vpop.f32.mrf.mxu0
    %v265 = vadd.f32 %v130, %v264
    %v266 = vpop.f32.mrf.mxu0
    %267 = vmatprep.mubr.bf16.mxu0 0
    %268 = vmatmul.mubr.bf16.gmra.mxu0 %v164
    %v269 = vpop.f32.mrf.mxu0
    %v270 = vadd.f32 %v130, %v269
    %v271 = vpop.f32.mrf.mxu0
    %v272 = vpop.f32.mrf.mxu0
    %v273 = vadd.f32 %v130, %v272
    %v274 = vpop.f32.mrf.mxu0
    %275 = vmatprep.mubr.bf16.mxu0 0
    %276 = vmatmul.mubr.bf16.gmra.mxu0 %v165
    %v277 = vpop.f32.mrf.mxu0
    %v278 = vadd.f32 %v130, %v277
    %v279 = vpop.f32.mrf.mxu0
    %v280 = vpop.f32.mrf.mxu0
    %v281 = vadd.f32 %v130, %v280
    %v282 = vpop.f32.mrf.mxu0
    %283 = vmatprep.mubr.bf16.mxu0 0
    %284 = vmatmul.mubr.bf16.gmra.mxu0 %v166
    %v285 = vpop.f32.mrf.mxu0
    %v286 = vadd.f32 %v130, %v285
    %v287 = vpop.f32.mrf.mxu0
    %v288 = vpop.f32.mrf.mxu0
    %v289 = vadd.f32 %v130, %v288
    %v290 = vpop.f32.mrf.mxu0
    %291 = vmatprep.mubr.bf16.mxu0 0
    %292 = vmatmul.mubr.bf16.gmra.mxu0 %v167
    %v293 = vpop.f32.mrf.mxu0
    %v294 = vadd.f32 %v130, %v293
    %v295 = vpop.f32.mrf.mxu0
    %v296 = vpop.f32.mrf.mxu0
    %v297 = vadd.f32 %v130, %v296
    %v298 = vpop.f32.mrf.mxu0
    %299 = vmatprep.mubr.bf16.mxu0 0
    %300 = vmatmul.mubr.bf16.gmra.mxu0 %v168
    %v301 = vpop.f32.mrf.mxu0
    %v302 = vadd.f32 %v130, %v301
    %v303 = vpop.f32.mrf.mxu0
    %v304 = vpop.f32.mrf.mxu0
    %v305 = vadd.f32 %v130, %v304
    %v306 = vpop.f32.mrf.mxu0
    %307 = vmatprep.mubr.bf16.mxu0 0
    %308 = vmatmul.mubr.bf16.gmra.mxu0 %v169
    %v309 = vpop.f32.mrf.mxu0
    %v310 = vadd.f32 %v130, %v309
    %v311 = vpop.f32.mrf.mxu0
    %v312 = vpop.f32.mrf.mxu0
    %v313 = vadd.f32 %v130, %v312
    %v314 = vpop.f32.mrf.mxu0
    %315 = vmatprep.mubr.bf16.mxu0 0
    %316 = vmatmul.mubr.bf16.gmra.mxu0 %v170
    %v317 = vpop.f32.mrf.mxu0
    %v318 = vadd.f32 %v130, %v317
    %v319 = vpop.f32.mrf.mxu0
    %v320 = vpop.f32.mrf.mxu0
    %v321 = vadd.f32 %v130, %v320
    %v322 = vpop.f32.mrf.mxu0
    %323 = vdwg.mxu0
    %v324 = vmax.f32 %v262, 0.0
    %v325 = vmax.f32 %v265, 0.0
    %v326 = vmax.f32 %v270, 0.0
    %v327 = vmax.f32 %v273, 0.0
    %v328 = vmax.f32 %v278, 0.0
    %v329 = vmax.f32 %v281, 0.0
    %v330 = vmax.f32 %v286, 0.0
    %v331 = vmax.f32 %v289, 0.0
    %v332 = vmax.f32 %v294, 0.0
    %v333 = vmax.f32 %v297, 0.0
    %v334 = vmax.f32 %v302, 0.0
    %v335 = vmax.f32 %v305, 0.0
    %v336 = vmax.f32 %v310, 0.0
    %v337 = vmax.f32 %v313, 0.0
    %v338 = vmax.f32 %v318, 0.0
    %v339 = vmax.f32 %v321, 0.0
    %v340 = vld [vmem:[#allocation7 + $0x1] sm:$0x1]
    %v341 = vlaneseq
    %v342 = vshrl.u32 %v341, 7
    %v343 = vsub.s32 0, %v342
    %v344 = vrot.slane %v340, %v343
    %v345 = vmul.f32 %v324, %v344
    %v346 = vmul.f32 %v325, %v344
    %v347 = vmul.f32 %v326, %v344
    %v348 = vmul.f32 %v327, %v344
    %v349 = vmul.f32 %v328, %v344
    %v350 = vmul.f32 %v329, %v344
    %v351 = vmul.f32 %v330, %v344
    %v352 = vmul.f32 %v331, %v344
    %v353 = vmul.f32 %v332, %v344
    %v354 = vmul.f32 %v333, %v344
    %v355 = vmul.f32 %v334, %v344
    %v356 = vmul.f32 %v335, %v344
    %v357 = vmul.f32 %v336, %v344
    %v358 = vmul.f32 %v337, %v344
    %v359 = vmul.f32 %v338, %v344
    %v360 = vmul.f32 %v339, %v344
    %v361 = vld [vmem:[#allocation7 + $0x2] sm:$0x1]
    %v362 = vlaneseq
    %v363 = vshrl.u32 %v362, 7
    %v364 = vsub.s32 0, %v363
    %v365 = vrot.slane %v361, %v364
    %v366 = vadd.f32 %v345, %v365
    %v367 = vadd.f32 %v346, %v365
    %v368 = vadd.f32 %v347, %v365
    %v369 = vadd.f32 %v348, %v365
    %v370 = vadd.f32 %v349, %v365
    %v371 = vadd.f32 %v350, %v365
    %v372 = vadd.f32 %v351, %v365
    %v373 = vadd.f32 %v352, %v365
    %v374 = vadd.f32 %v353, %v365
    %v375 = vadd.f32 %v354, %v365
    %v376 = vadd.f32 %v355, %v365
    %v377 = vadd.f32 %v356, %v365
    %v378 = vadd.f32 %v357, %v365
    %v379 = vadd.f32 %v358, %v365
    %v380 = vadd.f32 %v359, %v365
    %v381 = vadd.f32 %v360, %v365
    %v382 = vpack.c.bf16 %v367, %v366
    %v383 = vpack.c.bf16 %v369, %v368
    %v384 = vpack.c.bf16 %v371, %v370
    %v385 = vpack.c.bf16 %v373, %v372
    %v386 = vpack.c.bf16 %v375, %v374
    %v387 = vpack.c.bf16 %v377, %v376
    %v388 = vpack.c.bf16 %v379, %v378
    %v389 = vpack.c.bf16 %v381, %v380
    %v390 = vld [vmem:[#allocation8] sm:$0xf]
    %v391 = vld [vmem:[#allocation8 + $0x4] sm:$0xf]
    %v392 = vld [vmem:[#allocation8 + $0x8] sm:$0xf]
    %v393 = vld [vmem:[#allocation8 + $0xc] sm:$0xf]
    %v394 = vld [vmem:[#allocation8 + $0x10] sm:$0xf]
    %v395 = vld [vmem:[#allocation8 + $0x14] sm:$0xf]
    %v396 = vld [vmem:[#allocation8 + $0x18] sm:$0xf]
    %v397 = vld [vmem:[#allocation8 + $0x1c] sm:$0xf]
    %v398 = vld [vmem:[#allocation8 + $0x20] sm:$0xf]
    %v399 = vld [vmem:[#allocation8 + $0x24] sm:$0xf]
    %v400 = vld [vmem:[#allocation8 + $0x28] sm:$0xf]
    %v401 = vld [vmem:[#allocation8 + $0x2c] sm:$0xf]
    %v402 = vld [vmem:[#allocation8 + $0x30] sm:$0xf]
    %v403 = vld [vmem:[#allocation8 + $0x34] sm:$0xf]
    %v404 = vld [vmem:[#allocation8 + $0x38] sm:$0xf]
    %v405 = vld [vmem:[#allocation8 + $0x3c] sm:$0xf]
    %v406 = vld [vmem:[%s4] sm:$0x1]
    %v407 = vlaneseq
    %v408 = vshrl.u32 %v407, 7
    %v409 = vsub.s32 0, %v408
    %v410 = vrot.slane %v406, %v409
    %v427 = vunpack.c.l.b16 %v390
    %v428 = vunpack.c.l.b16 %v391
    %v429 = vunpack.c.l.b16 %v392
    %v430 = vunpack.c.l.b16 %v393
    %v431 = vunpack.c.l.b16 %v394
    %v432 = vunpack.c.l.b16 %v395
    %v433 = vunpack.c.l.b16 %v396
    %v434 = vunpack.c.l.b16 %v397
    %v435 = vunpack.c.l.b16 %v398
    %v436 = vunpack.c.l.b16 %v399
    %v437 = vunpack.c.l.b16 %v400
    %v438 = vunpack.c.l.b16 %v401
    %v439 = vunpack.c.l.b16 %v402
    %v440 = vunpack.c.l.b16 %v403
    %v441 = vunpack.c.l.b16 %v404
    %v442 = vunpack.c.l.b16 %v405
    %v443 = vpack.c.b16 %v428, %v427
    %v444 = vpack.c.b16 %v430, %v429
    %v445 = vpack.c.b16 %v432, %v431
    %v446 = vpack.c.b16 %v434, %v433
    %v447 = vpack.c.b16 %v436, %v435
    %v448 = vpack.c.b16 %v438, %v437
    %v449 = vpack.c.b16 %v440, %v439
    %v450 = vpack.c.b16 %v442, %v441
    %459 = vmatprep.subr.bf16.mxu0 0
    %460 = vmatpush1.bf16.msra.mxu0 %v450
    %461 = vmatprep.subr.bf16.mxu0 0
    %462 = vmatpush1.bf16.msra.mxu0 %v449
    %463 = vmatprep.subr.bf16.mxu0 0
    %464 = vmatpush1.bf16.msra.mxu0 %v448
    %465 = vmatprep.subr.bf16.mxu0 0
    %466 = vmatpush1.bf16.msra.mxu0 %v447
    %467 = vmatprep.subr.bf16.mxu0 0
    %468 = vmatpush1.bf16.msra.mxu0 %v446
    %469 = vmatprep.subr.bf16.mxu0 0
    %470 = vmatpush1.bf16.msra.mxu0 %v445
    %471 = vmatprep.subr.bf16.mxu0 0
    %472 = vmatpush1.bf16.msra.mxu0 %v444
    %473 = vmatprep.subr.bf16.mxu0 0
    %474 = vmatpush1.bf16.msra.mxu0 %v443
    %475 = vmatprep.subr.bf16.mxu0 0
    %476 = vmatpush2.bf16.msra.mxu0 0
    %477 = vmatprep.subr.bf16.mxu0 0
    %478 = vmatpush2.bf16.msra.mxu0 0
    %479 = vmatprep.subr.bf16.mxu0 0
    %480 = vmatpush2.bf16.msra.mxu0 0
    %481 = vmatprep.subr.bf16.mxu0 0
    %482 = vmatpush2.bf16.msra.mxu0 0
    %483 = vmatprep.subr.bf16.mxu0 0
    %484 = vmatpush2.bf16.msra.mxu0 0
    %485 = vmatprep.subr.bf16.mxu0 0
    %486 = vmatpush2.bf16.msra.mxu0 0
    %487 = vmatprep.subr.bf16.mxu0 0
    %488 = vmatpush2.bf16.msra.mxu0 0
    %489 = vmatprep.subr.bf16.mxu0 0
    %490 = vmatpush2.bf16.msra.mxu0 0
    %491 = vmatprep.mubr.bf16.mxu0 0
    %492 = vmatmul.mubr.bf16.gmra.mxu0 %v382
    %v493 = vpop.f32.mrf.mxu0
    %v494 = vadd.f32 %v410, %v493
    %v495 = vpop.f32.mrf.mxu0
    %v496 = vpop.f32.mrf.mxu0
    %v497 = vadd.f32 %v410, %v496
    %v498 = vpop.f32.mrf.mxu0
    %499 = vmatprep.mubr.bf16.mxu0 0
    %500 = vmatmul.mubr.bf16.gmra.mxu0 %v383
    %v501 = vpop.f32.mrf.mxu0
    %v502 = vadd.f32 %v410, %v501
    %v503 = vpop.f32.mrf.mxu0
    %v504 = vpop.f32.mrf.mxu0
    %v505 = vadd.f32 %v410, %v504
    %v506 = vpop.f32.mrf.mxu0
    %507 = vmatprep.mubr.bf16.mxu0 0
    %508 = vmatmul.mubr.bf16.gmra.mxu0 %v384
    %v509 = vpop.f32.mrf.mxu0
    %v510 = vadd.f32 %v410, %v509
    %v511 = vpop.f32.mrf.mxu0
    %v512 = vpop.f32.mrf.mxu0
    %v513 = vadd.f32 %v410, %v512
    %v514 = vpop.f32.mrf.mxu0
    %515 = vmatprep.mubr.bf16.mxu0 0
    %516 = vmatmul.mubr.bf16.gmra.mxu0 %v385
    %v517 = vpop.f32.mrf.mxu0
    %v518 = vadd.f32 %v410, %v517
    %v519 = vpop.f32.mrf.mxu0
    %v520 = vpop.f32.mrf.mxu0
    %v521 = vadd.f32 %v410, %v520
    %v522 = vpop.f32.mrf.mxu0
    %523 = vmatprep.mubr.bf16.mxu0 0
    %524 = vmatmul.mubr.bf16.gmra.mxu0 %v386
    %v525 = vpop.f32.mrf.mxu0
    %v526 = vadd.f32 %v410, %v525
    %v527 = vpop.f32.mrf.mxu0
    %v528 = vpop.f32.mrf.mxu0
    %v529 = vadd.f32 %v410, %v528
    %v530 = vpop.f32.mrf.mxu0
    %531 = vmatprep.mubr.bf16.mxu0 0
    %532 = vmatmul.mubr.bf16.gmra.mxu0 %v387
    %v533 = vpop.f32.mrf.mxu0
    %v534 = vadd.f32 %v410, %v533
    %v535 = vpop.f32.mrf.mxu0
    %v536 = vpop.f32.mrf.mxu0
    %v537 = vadd.f32 %v410, %v536
    %v538 = vpop.f32.mrf.mxu0
    %539 = vmatprep.mubr.bf16.mxu0 0
    %540 = vmatmul.mubr.bf16.gmra.mxu0 %v388
    %v541 = vpop.f32.mrf.mxu0
    %v542 = vadd.f32 %v410, %v541
    %v543 = vpop.f32.mrf.mxu0
    %v544 = vpop.f32.mrf.mxu0
    %v545 = vadd.f32 %v410, %v544
    %v546 = vpop.f32.mrf.mxu0
    %547 = vmatprep.mubr.bf16.mxu0 0
    %548 = vmatmul.mubr.bf16.gmra.mxu0 %v389
    %v549 = vpop.f32.mrf.mxu0
    %v550 = vadd.f32 %v410, %v549
    %v551 = vpop.f32.mrf.mxu0
    %v552 = vpop.f32.mrf.mxu0
    %v553 = vadd.f32 %v410, %v552
    %v554 = vpop.f32.mrf.mxu0
    %555 = vdwg.mxu0
    %v556 = vmax.f32 %v494, 0.0
    %v557 = vmax.f32 %v497, 0.0
    %v558 = vmax.f32 %v502, 0.0
    %v559 = vmax.f32 %v505, 0.0
    %v560 = vmax.f32 %v510, 0.0
    %v561 = vmax.f32 %v513, 0.0
    %v562 = vmax.f32 %v518, 0.0
    %v563 = vmax.f32 %v521, 0.0
    %v564 = vmax.f32 %v526, 0.0
    %v565 = vmax.f32 %v529, 0.0
    %v566 = vmax.f32 %v534, 0.0
    %v567 = vmax.f32 %v537, 0.0
    %v568 = vmax.f32 %v542, 0.0
    %v569 = vmax.f32 %v545, 0.0
    %v570 = vmax.f32 %v550, 0.0
    %v571 = vmax.f32 %v553, 0.0
    %v572 = vld [vmem:[%s4 + $0x1] sm:$0x1]
    %v573 = vlaneseq
    %v574 = vshrl.u32 %v573, 7
    %v575 = vsub.s32 0, %v574
    %v576 = vrot.slane %v572, %v575
    %v577 = vmul.f32 %v556, %v576
    %v578 = vmul.f32 %v557, %v576
    %v579 = vmul.f32 %v558, %v576
    %v580 = vmul.f32 %v559, %v576
    %v581 = vmul.f32 %v560, %v576
    %v582 = vmul.f32 %v561, %v576
    %v583 = vmul.f32 %v562, %v576
    %v584 = vmul.f32 %v563, %v576
    %v585 = vmul.f32 %v564, %v576
    %v586 = vmul.f32 %v565, %v576
    %v587 = vmul.f32 %v566, %v576
    %v588 = vmul.f32 %v567, %v576
    %v589 = vmul.f32 %v568, %v576
    %v590 = vmul.f32 %v569, %v576
    %v591 = vmul.f32 %v570, %v576
    %v592 = vmul.f32 %v571, %v576
    %v593 = vld [vmem:[%s4 + $0x2] sm:$0x1]
    %v594 = vlaneseq
    %v595 = vshrl.u32 %v594, 7
    %v596 = vsub.s32 0, %v595
    %v597 = vrot.slane %v593, %v596
    %v598 = vadd.f32 %v577, %v597
    %v599 = vadd.f32 %v578, %v597
    %v600 = vadd.f32 %v579, %v597
    %v601 = vadd.f32 %v580, %v597
    %v602 = vadd.f32 %v581, %v597
    %v603 = vadd.f32 %v582, %v597
    %v604 = vadd.f32 %v583, %v597
    %v605 = vadd.f32 %v584, %v597
    %v606 = vadd.f32 %v585, %v597
    %v607 = vadd.f32 %v586, %v597
    %v608 = vadd.f32 %v587, %v597
    %v609 = vadd.f32 %v588, %v597
    %v610 = vadd.f32 %v589, %v597
    %v611 = vadd.f32 %v590, %v597
    %v612 = vadd.f32 %v591, %v597
    %v613 = vadd.f32 %v592, %v597
    %v614 = vpack.c.bf16 %v599, %v598
    %v615 = vpack.c.bf16 %v601, %v600
    %v616 = vpack.c.bf16 %v603, %v602
    %v617 = vpack.c.bf16 %v605, %v604
    %v618 = vpack.c.bf16 %v607, %v606
    %v619 = vpack.c.bf16 %v609, %v608
    %v620 = vpack.c.bf16 %v611, %v610
    %v621 = vpack.c.bf16 %v613, %v612
    %v622 = vld [vmem:[#allocation10] sm:$0xf]
    %v623 = vld [vmem:[#allocation10 + $0x4] sm:$0xf]
    %v624 = vld [vmem:[#allocation10 + $0x8] sm:$0xf]
    %v625 = vld [vmem:[#allocation10 + $0xc] sm:$0xf]
    %v626 = vld [vmem:[#allocation10 + $0x10] sm:$0xf]
    %v627 = vld [vmem:[#allocation10 + $0x14] sm:$0xf]
    %v628 = vld [vmem:[#allocation10 + $0x18] sm:$0xf]
    %v629 = vld [vmem:[#allocation10 + $0x1c] sm:$0xf]
    %v630 = vld [vmem:[#allocation10 + $0x20] sm:$0xf]
    %v631 = vld [vmem:[#allocation10 + $0x24] sm:$0xf]
    %v632 = vld [vmem:[#allocation10 + $0x28] sm:$0xf]
    %v633 = vld [vmem:[#allocation10 + $0x2c] sm:$0xf]
    %v634 = vld [vmem:[#allocation10 + $0x30] sm:$0xf]
    %v635 = vld [vmem:[#allocation10 + $0x34] sm:$0xf]
    %v636 = vld [vmem:[#allocation10 + $0x38] sm:$0xf]
    %v637 = vld [vmem:[#allocation10 + $0x3c] sm:$0xf]
    %v638 = vld [vmem:[%s6] sm:$0x1]
    %v639 = vlaneseq
    %v640 = vshrl.u32 %v639, 7
    %v641 = vsub.s32 0, %v640
    %v642 = vrot.slane %v638, %v641
    %v659 = vunpack.c.l.b16 %v622
    %v660 = vunpack.c.l.b16 %v623
    %v661 = vunpack.c.l.b16 %v624
    %v662 = vunpack.c.l.b16 %v625
    %v663 = vunpack.c.l.b16 %v626
    %v664 = vunpack.c.l.b16 %v627
    %v665 = vunpack.c.l.b16 %v628
    %v666 = vunpack.c.l.b16 %v629
    %v667 = vunpack.c.l.b16 %v630
    %v668 = vunpack.c.l.b16 %v631
    %v669 = vunpack.c.l.b16 %v632
    %v670 = vunpack.c.l.b16 %v633
    %v671 = vunpack.c.l.b16 %v634
    %v672 = vunpack.c.l.b16 %v635
    %v673 = vunpack.c.l.b16 %v636
    %v674 = vunpack.c.l.b16 %v637
    %v675 = vpack.c.b16 %v660, %v659
    %v676 = vpack.c.b16 %v662, %v661
    %v677 = vpack.c.b16 %v664, %v663
    %v678 = vpack.c.b16 %v666, %v665
    %v679 = vpack.c.b16 %v668, %v667
    %v680 = vpack.c.b16 %v670, %v669
    %v681 = vpack.c.b16 %v672, %v671
    %v682 = vpack.c.b16 %v674, %v673
    %691 = vmatprep.subr.bf16.mxu0 0
    %692 = vmatpush1.bf16.msra.mxu0 %v682
    %693 = vmatprep.subr.bf16.mxu0 0
    %694 = vmatpush1.bf16.msra.mxu0 %v681
    %695 = vmatprep.subr.bf16.mxu0 0
    %696 = vmatpush1.bf16.msra.mxu0 %v680
    %697 = vmatprep.subr.bf16.mxu0 0
    %698 = vmatpush1.bf16.msra.mxu0 %v679
    %699 = vmatprep.subr.bf16.mxu0 0
    %700 = vmatpush1.bf16.msra.mxu0 %v678
    %701 = vmatprep.subr.bf16.mxu0 0
    %702 = vmatpush1.bf16.msra.mxu0 %v677
    %703 = vmatprep.subr.bf16.mxu0 0
    %704 = vmatpush1.bf16.msra.mxu0 %v676
    %705 = vmatprep.subr.bf16.mxu0 0
    %706 = vmatpush1.bf16.msra.mxu0 %v675
    %707 = vmatprep.subr.bf16.mxu0 0
    %708 = vmatpush2.bf16.msra.mxu0 0
    %709 = vmatprep.subr.bf16.mxu0 0
    %710 = vmatpush2.bf16.msra.mxu0 0
    %711 = vmatprep.subr.bf16.mxu0 0
    %712 = vmatpush2.bf16.msra.mxu0 0
    %713 = vmatprep.subr.bf16.mxu0 0
    %714 = vmatpush2.bf16.msra.mxu0 0
    %715 = vmatprep.subr.bf16.mxu0 0
    %716 = vmatpush2.bf16.msra.mxu0 0
    %717 = vmatprep.subr.bf16.mxu0 0
    %718 = vmatpush2.bf16.msra.mxu0 0
    %719 = vmatprep.subr.bf16.mxu0 0
    %720 = vmatpush2.bf16.msra.mxu0 0
    %721 = vmatprep.subr.bf16.mxu0 0
    %722 = vmatpush2.bf16.msra.mxu0 0
    %723 = vmatprep.mubr.bf16.mxu0 0
    %724 = vmatmul.mubr.bf16.gmra.mxu0 %v614
    %v725 = vpop.f32.mrf.mxu0
    %v726 = vadd.f32 %v642, %v725
    %v727 = vpop.f32.mrf.mxu0
    %v728 = vpop.f32.mrf.mxu0
    %v729 = vadd.f32 %v642, %v728
    %v730 = vpop.f32.mrf.mxu0
    %731 = vmatprep.mubr.bf16.mxu0 0
    %732 = vmatmul.mubr.bf16.gmra.mxu0 %v615
    %v733 = vpop.f32.mrf.mxu0
    %v734 = vadd.f32 %v642, %v733
    %v735 = vpop.f32.mrf.mxu0
    %v736 = vpop.f32.mrf.mxu0
    %v737 = vadd.f32 %v642, %v736
    %v738 = vpop.f32.mrf.mxu0
    %739 = vmatprep.mubr.bf16.mxu0 0
    %740 = vmatmul.mubr.bf16.gmra.mxu0 %v616
    %v741 = vpop.f32.mrf.mxu0
    %v742 = vadd.f32 %v642, %v741
    %v743 = vpop.f32.mrf.mxu0
    %v744 = vpop.f32.mrf.mxu0
    %v745 = vadd.f32 %v642, %v744
    %v746 = vpop.f32.mrf.mxu0
    %747 = vmatprep.mubr.bf16.mxu0 0
    %748 = vmatmul.mubr.bf16.gmra.mxu0 %v617
    %v749 = vpop.f32.mrf.mxu0
    %v750 = vadd.f32 %v642, %v749
    %v751 = vpop.f32.mrf.mxu0
    %v752 = vpop.f32.mrf.mxu0
    %v753 = vadd.f32 %v642, %v752
    %v754 = vpop.f32.mrf.mxu0
    %755 = vmatprep.mubr.bf16.mxu0 0
    %756 = vmatmul.mubr.bf16.gmra.mxu0 %v618
    %v757 = vpop.f32.mrf.mxu0
    %v758 = vadd.f32 %v642, %v757
    %v759 = vpop.f32.mrf.mxu0
    %v760 = vpop.f32.mrf.mxu0
    %v761 = vadd.f32 %v642, %v760
    %v762 = vpop.f32.mrf.mxu0
    %763 = vmatprep.mubr.bf16.mxu0 0
    %764 = vmatmul.mubr.bf16.gmra.mxu0 %v619
    %v765 = vpop.f32.mrf.mxu0
    %v766 = vadd.f32 %v642, %v765
    %v767 = vpop.f32.mrf.mxu0
    %v768 = vpop.f32.mrf.mxu0
    %v769 = vadd.f32 %v642, %v768
    %v770 = vpop.f32.mrf.mxu0
    %771 = vmatprep.mubr.bf16.mxu0 0
    %772 = vmatmul.mubr.bf16.gmra.mxu0 %v620
    %v773 = vpop.f32.mrf.mxu0
    %v774 = vadd.f32 %v642, %v773
    %v775 = vpop.f32.mrf.mxu0
    %v776 = vpop.f32.mrf.mxu0
    %v777 = vadd.f32 %v642, %v776
    %v778 = vpop.f32.mrf.mxu0
    %779 = vmatprep.mubr.bf16.mxu0 0
    %780 = vmatmul.mubr.bf16.gmra.mxu0 %v621
    %v781 = vpop.f32.mrf.mxu0
    %v782 = vadd.f32 %v642, %v781
    %v783 = vpop.f32.mrf.mxu0
    %v784 = vpop.f32.mrf.mxu0
    %v785 = vadd.f32 %v642, %v784
    %v786 = vpop.f32.mrf.mxu0
    %787 = vdwg.mxu0
    %788 = vst [vmem:[#allocation11] sm:$0xff] %v726
    %789 = vst [vmem:[#allocation11 + $0x8] sm:$0xff] %v729
    %790 = vst [vmem:[#allocation11 + $0x10] sm:$0xff] %v734
    %791 = vst [vmem:[#allocation11 + $0x18] sm:$0xff] %v737
    %792 = vst [vmem:[#allocation11 + $0x20] sm:$0xff] %v742
    %793 = vst [vmem:[#allocation11 + $0x28] sm:$0xff] %v745
    %794 = vst [vmem:[#allocation11 + $0x30] sm:$0xff] %v750
    %795 = vst [vmem:[#allocation11 + $0x38] sm:$0xff] %v753
    %796 = vst [vmem:[#allocation11 + $0x40] sm:$0xff] %v758
    %797 = vst [vmem:[#allocation11 + $0x48] sm:$0xff] %v761
    %798 = vst [vmem:[#allocation11 + $0x50] sm:$0xff] %v766
    %799 = vst [vmem:[#allocation11 + $0x58] sm:$0xff] %v769
    %800 = vst [vmem:[#allocation11 + $0x60] sm:$0xff] %v774
    %801 = vst [vmem:[#allocation11 + $0x68] sm:$0xff] %v777
    %802 = vst [vmem:[#allocation11 + $0x70] sm:$0xff] %v782
    %803 = vst [vmem:[#allocation11 + $0x78] sm:$0xff] %v785
    // Predicated region
    $region50: #{tpu_custom_call.1} parent=1 // pred_check
      _
    $region51: #{tpu_custom_call.1} parent=1 // pred_check_branch
      %805 = sbr.rel (0) target = $region53
    $region52: #{tpu_custom_call.1} parent=1 // pred_region
      %s807 = ssub.s32 2048, 2048
      %808 = vsyncadd [#allocation4], %s807
      %s809 = sshll.u32 [#allocation11], 4
      %s810 = int_to_ptr.vmem [resolvable:$true] %s809
      %815 = dma.vmem_to_hbm [thread:$0]  %s810, 2048, %s7, [#allocation4], 128, 128, 8
    $region53: #{tpu_custom_call.1} parent=1 // pred_fallthru
      _
    // Predicated region
    $region54: #{tpu_custom_call.1} parent=1 // pred_check
      _
    $region55: #{tpu_custom_call.1} parent=1 // pred_check_branch
      %817 = sbr.rel (0) target = $region57
    $region56: #{tpu_custom_call.1} parent=1 // pred_region
      %818 = dma.done [#allocation4], 2048
    $region57: #{tpu_custom_call.1} parent=1 // pred_fallthru
      _
    %819 = vsyncpa [#allocation3], 1
    %820 = vsyncpa [#allocation6], 1
    %821 = vsyncpa [#allocation9], 1
    %822 = vsyncpa [#allocation4], 1

</llo_original>
